<compile_context>
chip_gen: v7x
topology: tpu7x:2x2x1
jax: 0.10.0
libtpu: 0.0.40
codegen_flags: <defaults>
</compile_context>

<pallas_src>
import jax
import jax.numpy as jnp
from jax.experimental import pallas as pl
from jax.experimental.pallas import tpu as pltpu

LANE = 128
SUBLANE = 8


def _round_up(x, m):
    return (x + m - 1) // m * m


def sampler_kernel(x_ref, eps_ref, w1_ref, b1_ref, w2_ref, b2_ref, p_ref, loss_ref):
    """Fused mu/sigma MLP + reparameterization + KL loss.

    x_ref:   [B, INP]            f32 (no lane padding; full-extent block)
    eps_ref: [B, OUT_P]          f32 Gaussian noise
    w1_ref:  [INP, 2*HID]        bf16 (mu cols [0:HID], sigma cols [HID:2*HID])
    b1_ref:  [1, 2*HID]          f32
    w2_ref:  [2*HID, 2*OUT_P]    bf16 (block-diagonal: mu block / sigma block)
    b2_ref:  [1, 2*OUT_P]        f32
    p_ref:   [B, OUT_P]          f32 lane-dense padded sample slab
    loss_ref: (1,1) SMEM scalar  f32
    """
    x = x_ref[...].astype(jnp.bfloat16)

    # Layer 1 (both branches in one MXU call, bf16 operands, f32 accumulation) + ReLU.
    h = jnp.maximum(
        jnp.dot(x, w1_ref[...], preferred_element_type=jnp.float32) + b1_ref[...],
        0.0)

    # Layer 2 (both branches in one MXU call via block-diagonal packing).
    out = (jnp.dot(h.astype(jnp.bfloat16), w2_ref[...],
                   preferred_element_type=jnp.float32) + b2_ref[...])

    out_p = p_ref.shape[-1]           # 128: vreg-aligned split boundary
    mu = out[:, :out_p]
    sigma = out[:, out_p:]

    # Single transcendental pass: exp(sigma) == e * e.
    e = jnp.exp(0.5 * sigma)

    # Reparameterization: eps ~ N(0,1) supplied by the wrapper.
    # TODO(synk): on hardware, eps could be generated in-kernel via
    # pltpu.prng_seed + pltpu.prng_random_bits (Box-Muller) to drop one HBM input.
    p_ref[...] = eps_ref[...] * e + mu

    # KL loss; padded output lanes have mu = sigma = 0 -> contribute exactly 0.
    loss_ref[0, 0] = -0.5 * jnp.sum(1.0 + sigma - mu * mu - e * e)


@jax.jit
def sampler_forward(x, eps, w1, b1, w2, b2):
    """x: [B, inp] f32, eps: [B, OUT_P] f32. Returns (p_pad [B, OUT_P], loss [1,1])."""
    B, inp = x.shape
    two_hid = w1.shape[1]
    two_out_p = w2.shape[1]
    out_p = two_out_p // 2

    flops = 2 * B * inp * two_hid + 2 * B * two_hid * two_out_p + 8 * B * out_p
    bytes_accessed = (4 * B * inp + 4 * B * out_p                 # x, eps
                      + 2 * w1.size + 4 * b1.size                 # bf16 w1, f32 b1
                      + 2 * w2.size + 4 * b2.size                 # bf16 w2, f32 b2
                      + 4 * B * out_p + 4)                        # p, loss
    cost = pl.CostEstimate(flops=flops,
                           transcendentals=B * out_p,
                           bytes_accessed=bytes_accessed)

    p_pad, loss = pl.pallas_call(
        sampler_kernel,
        out_shape=(
            jax.ShapeDtypeStruct((B, out_p), jnp.float32),
            jax.ShapeDtypeStruct((1, 1), jnp.float32),
        ),
        in_specs=[pl.BlockSpec(memory_space=pltpu.MemorySpace.VMEM)] * 6,
        out_specs=(
            pl.BlockSpec(memory_space=pltpu.MemorySpace.VMEM),
            pl.BlockSpec(memory_space=pltpu.MemorySpace.SMEM),
        ),
        cost_estimate=cost,
    )(x, eps, w1, b1, w2, b2)

    return p_pad, loss


def init_params(key, inp_dim, hid_dim, out_dim):
    """PyTorch-style Linear init; weights stored as [in_features, out_features]."""
    ks = jax.random.split(key, 8)
    s1 = 1.0 / jnp.sqrt(inp_dim)
    s2 = 1.0 / jnp.sqrt(hid_dim)
    return {
        "w1_mu":    jax.random.uniform(ks[0], (inp_dim, hid_dim), jnp.float32, -s1, s1),
        "b1_mu":    jax.random.uniform(ks[1], (1, hid_dim), jnp.float32, -s1, s1),
        "w2_mu":    jax.random.uniform(ks[2], (hid_dim, out_dim), jnp.float32, -s2, s2),
        "b2_mu":    jax.random.uniform(ks[3], (1, out_dim), jnp.float32, -s2, s2),
        "w1_sigma": jax.random.uniform(ks[4], (inp_dim, hid_dim), jnp.float32, -s1, s1),
        "b1_sigma": jax.random.uniform(ks[5], (1, hid_dim), jnp.float32, -s1, s1),
        "w2_sigma": jax.random.uniform(ks[6], (hid_dim, out_dim), jnp.float32, -s2, s2),
        "b2_sigma": jax.random.uniform(ks[7], (1, out_dim), jnp.float32, -s2, s2),
    }


def pack_params(params, inp_dim, hid_dim, out_dim):
    """Fuse mu/sigma weights into compact bf16 slabs.

    K dims (inp_dim, 2*hid_dim) are kept un-padded (only sublane alignment needed);
    only the layer-2 OUTPUT split boundary is padded to 128 lanes per branch so the
    mu/sigma slice in the kernel is vreg-aligned.
    """
    assert inp_dim % SUBLANE == 0 and hid_dim % SUBLANE == 0
    out_p = _round_up(out_dim, LANE)

    w1 = jnp.zeros((inp_dim, 2 * hid_dim), jnp.float32)
    w1 = w1.at[:, :hid_dim].set(params["w1_mu"])
    w1 = w1.at[:, hid_dim:].set(params["w1_sigma"])

    b1 = jnp.zeros((1, 2 * hid_dim), jnp.float32)
    b1 = b1.at[:, :hid_dim].set(params["b1_mu"])
    b1 = b1.at[:, hid_dim:].set(params["b1_sigma"])

    w2 = jnp.zeros((2 * hid_dim, 2 * out_p), jnp.float32)
    w2 = w2.at[:hid_dim, :out_dim].set(params["w2_mu"])
    w2 = w2.at[hid_dim:, out_p:out_p + out_dim].set(params["w2_sigma"])

    b2 = jnp.zeros((1, 2 * out_p), jnp.float32)
    b2 = b2.at[:, :out_dim].set(params["b2_mu"])
    b2 = b2.at[:, out_p:out_p + out_dim].set(params["b2_sigma"])

    return (w1.astype(jnp.bfloat16), b1,
            w2.astype(jnp.bfloat16), b2, out_p)


def reference_deterministic(x, params):
    """Pure-JAX f32 reference for the deterministic part (mu, sigma, loss)."""
    h_mu = jnp.maximum(x @ params["w1_mu"] + params["b1_mu"], 0.0)
    mu = h_mu @ params["w2_mu"] + params["b2_mu"]
    h_s = jnp.maximum(x @ params["w1_sigma"] + params["b1_sigma"], 0.0)
    sigma = h_s @ params["w2_sigma"] + params["b2_sigma"]
    loss = -0.5 * jnp.sum(1.0 + sigma - mu * mu - jnp.exp(sigma))
    return mu, sigma, loss


if __name__ == "__main__":
    # Small shapes implied by the module:
    #   gx: [batch, base_hidden]; Sampler(base_hidden, sampler_hidden, inp_size)
    B = 8           # batch of graphs
    INP_DIM = 32    # base_args.model['hidden_size']  (dim of gx)
    HID_DIM = 32    # args.sampler['hidden_size']
    OUT_DIM = 16    # inp_size

    key = jax.random.PRNGKey(0)
    k_x, k_p, k_eps = jax.random.split(key, 3)

    # TODO(synk): BaseModel / torch_geometric Batch are undefined in the source; we
    # treat the graph embedding gx directly as the kernel input instead.
    gx = jax.random.normal(k_x, (B, INP_DIM), jnp.float32)
    params = init_params(k_p, INP_DIM, HID_DIM, OUT_DIM)
    w1, b1, w2, b2, out_p = pack_params(params, INP_DIM, HID_DIM, OUT_DIM)

    # Gaussian noise for the reparameterization trick (randn_like(mu)).
    eps = jax.random.normal(k_eps, (B, out_p), jnp.float32)

    # TODO(synk): per-step amortization (fusing this head with the base-model
    # projection or batching many steps per pallas_call) lives at the FModel.forward
    # call site, outside this self-contained script.
    p_pad, p_loss = sampler_forward(gx, eps, w1, b1, w2, b2)
    p_pad = jax.block_until_ready(p_pad)
    p_loss = jax.block_until_ready(p_loss)

    # Consumer-side lazy slice to the logical output width (padded lanes hold raw eps).
    p = p_pad[:, :OUT_DIM]

    # Verify against the pure-JAX f32 reference (eps is known, so p is checkable).
    # Tolerances loosened for bf16 weight quantization (f32 accumulation).
    mu_ref, sigma_ref, loss_expected = reference_deterministic(gx, params)
    p_expected = eps[:, :OUT_DIM] * jnp.exp(0.5 * sigma_ref) + mu_ref

    assert p.shape == (B, OUT_DIM)
    assert bool(jnp.all(jnp.isfinite(p)))
    assert bool(jnp.allclose(p, p_expected, rtol=3e-2, atol=3e-2))
    assert bool(jnp.allclose(p_loss[0, 0], loss_expected, rtol=3e-2, atol=3e-2))

    # TODO(synk): FModel._train (Adam optimizer loop, random graph-edge sampling,
    # BCE loss over the F head) is a host-side training procedure with no Pallas
    # equivalent and is omitted; forward's returned values (p, p_loss) are produced here.

    print("KERNEL_OK")
</pallas_src>

<mosaic_0001>
module attributes {stable_mosaic.version = 11 : i64} {
  func.func @sampler_kernel(%arg0: memref<8x32xf32, #tpu.memory_space<vmem>>, %arg1: memref<8x128xf32, #tpu.memory_space<vmem>>, %arg2: memref<32x64xbf16, #tpu.memory_space<vmem>>, %arg3: memref<1x64xf32, #tpu.memory_space<vmem>>, %arg4: memref<64x256xbf16, #tpu.memory_space<vmem>>, %arg5: memref<1x256xf32, #tpu.memory_space<vmem>>, %arg6: memref<8x128xf32, #tpu.memory_space<vmem>>, %arg7: memref<1x1xf32, #tpu.memory_space<smem>>) attributes {dimension_semantics = [], scalar_prefetch = 0 : i64, scratch_operands = 0 : i64, tpu.core_type = #tpu.core_type<tc>} {
    %c0 = arith.constant 0 : index
    %c0_0 = arith.constant 0 : index
    %0 = vector.load %arg0[%c0, %c0_0] : memref<8x32xf32, #tpu.memory_space<vmem>>, vector<8x32xf32>
    %1 = arith.truncf %0 : vector<8x32xf32> to vector<8x32xbf16>
    %c0_1 = arith.constant 0 : index
    %c0_2 = arith.constant 0 : index
    %2 = vector.load %arg2[%c0_1, %c0_2] : memref<32x64xbf16, #tpu.memory_space<vmem>>, vector<32x64xbf16>
    %cst = arith.constant dense<0.000000e+00> : vector<8x64xf32>
    %3 = tpu.matmul %1, %2, %cst {dimension_numbers = #tpu.dot_dimension_numbers<[1], [0], [0], [1], [0, 0, 1, 1], [], []>} : vector<8x32xbf16>, vector<32x64xbf16>, vector<8x64xf32> -> vector<8x64xf32>
    %c0_3 = arith.constant 0 : index
    %c0_4 = arith.constant 0 : index
    %4 = vector.load %arg3[%c0_3, %c0_4] : memref<1x64xf32, #tpu.memory_space<vmem>>, vector<1x64xf32>
    %5 = vector.broadcast %4 : vector<1x64xf32> to vector<8x64xf32>
    %6 = arith.addf %3, %5 : vector<8x64xf32>
    %cst_5 = arith.constant 0.000000e+00 : f32
    %7 = vector.broadcast %cst_5 : f32 to vector<8x64xf32>
    %8 = arith.maximumf %6, %7 : vector<8x64xf32>
    %9 = arith.truncf %8 : vector<8x64xf32> to vector<8x64xbf16>
    %c0_6 = arith.constant 0 : index
    %c0_7 = arith.constant 0 : index
    %10 = vector.load %arg4[%c0_6, %c0_7] : memref<64x256xbf16, #tpu.memory_space<vmem>>, vector<64x256xbf16>
    %cst_8 = arith.constant dense<0.000000e+00> : vector<8x256xf32>
    %11 = tpu.matmul %9, %10, %cst_8 {dimension_numbers = #tpu.dot_dimension_numbers<[1], [0], [0], [1], [0, 0, 1, 1], [], []>} : vector<8x64xbf16>, vector<64x256xbf16>, vector<8x256xf32> -> vector<8x256xf32>
    %c0_9 = arith.constant 0 : index
    %c0_10 = arith.constant 0 : index
    %12 = vector.load %arg5[%c0_9, %c0_10] : memref<1x256xf32, #tpu.memory_space<vmem>>, vector<1x256xf32>
    %13 = vector.broadcast %12 : vector<1x256xf32> to vector<8x256xf32>
    %14 = arith.addf %11, %13 : vector<8x256xf32>
    %15 = vector.extract_strided_slice %14 {offsets = [0, 0], sizes = [8, 128], strides = [1, 1]} : vector<8x256xf32> to vector<8x128xf32>
    %16 = vector.extract_strided_slice %14 {offsets = [0, 128], sizes = [8, 128], strides = [1, 1]} : vector<8x256xf32> to vector<8x128xf32>
    %cst_11 = arith.constant 5.000000e-01 : f32
    %17 = vector.broadcast %cst_11 : f32 to vector<8x128xf32>
    %18 = arith.mulf %17, %16 : vector<8x128xf32>
    %19 = math.exp %18 : vector<8x128xf32>
    %c0_12 = arith.constant 0 : index
    %c0_13 = arith.constant 0 : index
    %20 = vector.load %arg1[%c0_12, %c0_13] : memref<8x128xf32, #tpu.memory_space<vmem>>, vector<8x128xf32>
    %21 = arith.mulf %20, %19 : vector<8x128xf32>
    %22 = arith.addf %21, %15 : vector<8x128xf32>
    %c0_14 = arith.constant 0 : index
    %c0_15 = arith.constant 0 : index
    %23 = vector.load %arg6[%c0_14, %c0_15] : memref<8x128xf32, #tpu.memory_space<vmem>>, vector<8x128xf32>
    tpu.vector_store %arg6[%c0_14, %c0_15], %22 {strides = array<i32>} : memref<8x128xf32, #tpu.memory_space<vmem>>, vector<8x128xf32>,
    %cst_16 = arith.constant 1.000000e+00 : f32
    %24 = vector.broadcast %cst_16 : f32 to vector<8x128xf32>
    %25 = arith.addf %24, %16 : vector<8x128xf32>
    %26 = arith.mulf %15, %15 : vector<8x128xf32>
    %27 = arith.subf %25, %26 : vector<8x128xf32>
    %28 = arith.mulf %19, %19 : vector<8x128xf32>
    %29 = arith.subf %27, %28 : vector<8x128xf32>
    %30 = vector.shape_cast %29 : vector<8x128xf32> to vector<1x8x128xf32>
    %cst_17 = arith.constant dense<0.000000e+00> : vector<1xf32>
    %31 = vector.multi_reduction <add>, %30, %cst_17 [1, 2] : vector<1x8x128xf32> to vector<1xf32>
    %32 = vector.shape_cast %31 : vector<1xf32> to vector<1x1x1xf32>
    %33 = vector.extract %32[0, 0, 0] : f32 from vector<1x1x1xf32>
    %cst_18 = arith.constant -5.000000e-01 : f32
    %34 = arith.mulf %cst_18, %33 : f32
    %c0_19 = arith.constant 0 : index
    %c0_20 = arith.constant 0 : index
    %35 = memref.load %arg7[%c0_19, %c0_20] : memref<1x1xf32, #tpu.memory_space<smem>>
    memref.store %34, %arg7[%c0_19, %c0_20] : memref<1x1xf32, #tpu.memory_space<smem>>
    return
  }
}

</mosaic_0001>

<llo_original>
// kernel: sampler_forward.1
$region0: #{sampler_forward.1}
  #allocation0 [shape = 'u32[]', space=smem, size = 0x4, offset = 0x4, fixed_abs, tag = 'smem constant byte address 0x4 - core index']
  #allocation1 [shape = 'u32[144,128]{1,0:T(1,128)}', space=vmem, size = 0x12000, scoped, tag = 'internal scratch']
  %s0 = inlined_call_operand.hbm [shape: f32[8,32], index: 0, kind: input, shape index: {}]
  %s1 = inlined_call_operand.hbm [shape: f32[8,128], index: 1, kind: input, shape index: {}]
  %s2 = inlined_call_operand.hbm [shape: bf16[32,64], index: 2, kind: input, shape index: {}]
  %s3 = inlined_call_operand.vmem [shape: f32[1,64], index: 3, kind: input, shape index: {}]
  %s4 = inlined_call_operand.hbm [shape: bf16[64,256], index: 4, kind: input, shape index: {}]
  %s5 = inlined_call_operand.vmem [shape: f32[1,256], index: 5, kind: input, shape index: {}]
  %s6 = inlined_call_operand.hbm [shape: f32[8,128], index: 6, kind: output, shape index: {0}]
  %s7 = inlined_call_operand.hbm [shape: f32[1,1], index: 7, kind: output, shape index: {1}]
  %8 = xla_tuple %s6, %s7
  %s9 = sld [smem:[#allocation0]]
  $region58: #{sampler_forward.1} parent=0
    _
  %s11 = ssub.s32 1, %s9
  %s12 = scalar_select 0, %s11, %s9
  $region1: #{sampler_forward.1} parent=0
    #allocation2 [shape = 'u8[4096]{0}', space=vmem, size = 0x1000, scoped, tag = 'input window, operand 0, single buffered']
    #allocation3 [shape = 's32[1]{0}', space=sflag, size = 0x4, scoped, tag = 'scoped memory for sampler_forward.1']
    #allocation4 [shape = 's32[1]{0}', space=sflag, size = 0x4, scoped, tag = 'scoped memory for sampler_forward.1']
    #allocation5 [shape = 's32[1]{0}', space=sflag, size = 0x4, scoped, tag = 'scoped memory for sampler_forward.1']
    #allocation6 [shape = 'u8[4096]{0}', space=vmem, size = 0x1000, scoped, tag = 'input window, operand 1, single buffered']
    #allocation7 [shape = 's32[1]{0}', space=sflag, size = 0x4, scoped, tag = 'scoped memory for sampler_forward.1']
    #allocation8 [shape = 'u8[8192]{0}', space=vmem, size = 0x2000, scoped, tag = 'input window, operand 2, single buffered']
    #allocation9 [shape = 'u8[32768]{0}', space=vmem, size = 0x8000, scoped, tag = 'input window, operand 4, single buffered']
    #allocation10 [shape = 's32[1]{0}', space=sflag, size = 0x4, scoped, tag = 'scoped memory for sampler_forward.1']
    #allocation11 [shape = 'u8[4096]{0}', space=vmem, size = 0x1000, scoped, tag = 'output window, operand 0, single buffered']
    #allocation12 [shape = 'u8[512]{0}', space=smem, size = 0x200, scoped, tag = 'output window, operand 1, single buffered']
    %13 = vsyncpa [#allocation3], 0
    %14 = vsyncpa [#allocation7], 0
    %15 = vsyncpa [#allocation10], 0
    %16 = vsyncpa [#allocation4], 0
    %17 = vsyncpa [#allocation5], 0
    // Predicated region
    $region2: #{sampler_forward.1} parent=1 // pred_check
      _
    $region3: #{sampler_forward.1} parent=1 // pred_check_branch
      %19 = sbr.rel (0) target = $region5
    $region4: #{sampler_forward.1} parent=1 // pred_region
      %s21 = ssub.s32 128, 128
      %22 = vsyncadd [#allocation3], %s21
      %s24 = sshll.u32 [#allocation2], 4
      %s25 = int_to_ptr.vmem [resolvable:$true] %s24
      %27 = dma.hbm_to_vmem [thread:$0]  %s0, 128, %s25, [#allocation3]
    $region5: #{sampler_forward.1} parent=1 // pred_fallthru
      _
    // Predicated region
    $region6: #{sampler_forward.1} parent=1 // pred_check
      _
    $region7: #{sampler_forward.1} parent=1 // pred_check_branch
      %29 = sbr.rel (0) target = $region9
    $region8: #{sampler_forward.1} parent=1 // pred_region
      %s31 = ssub.s32 128, 128
      %32 = vsyncadd [#allocation7], %s31
      %s34 = sshll.u32 [#allocation6], 4
      %s35 = int_to_ptr.vmem [resolvable:$true] %s34
      %37 = dma.hbm_to_vmem [thread:$0]  %s1, 128, %s35, [#allocation7]
    $region9: #{sampler_forward.1} parent=1 // pred_fallthru
      _
    // Predicated region
    $region10: #{sampler_forward.1} parent=1 // pred_check
      _
    $region11: #{sampler_forward.1} parent=1 // pred_check_branch
      %39 = sbr.rel (0) target = $region13
    $region12: #{sampler_forward.1} parent=1 // pred_region
      %s41 = ssub.s32 256, 256
      %42 = vsyncadd [#allocation7], %s41
      %s43 = sshll.u32 [#allocation8], 4
      %s44 = int_to_ptr.vmem [resolvable:$true] %s43
      %49 = dma.hbm_to_vmem [thread:$0]  %s2, 256, %s44, [#allocation7], 64, 64, 4
    $region13: #{sampler_forward.1} parent=1 // pred_fallthru
      _
    // Predicated region
    $region14: #{sampler_forward.1} parent=1 // pred_check
      _
    $region15: #{sampler_forward.1} parent=1 // pred_check_branch
      %51 = sbr.rel (0) target = $region17
    $region16: #{sampler_forward.1} parent=1 // pred_region
      _
    $region17: #{sampler_forward.1} parent=1 // pred_fallthru
      _
    // Predicated region
    $region18: #{sampler_forward.1} parent=1 // pred_check
      _
    $region19: #{sampler_forward.1} parent=1 // pred_check_branch
      %53 = sbr.rel (0) target = $region21
    $region20: #{sampler_forward.1} parent=1 // pred_region
      %s55 = ssub.s32 1024, 1024
      %56 = vsyncadd [#allocation10], %s55
      %s57 = sshll.u32 [#allocation9], 4
      %s58 = int_to_ptr.vmem [resolvable:$true] %s57
      %63 = dma.hbm_to_vmem [thread:$0]  %s4, 1024, %s58, [#allocation10], 128, 128, 8
    $region21: #{sampler_forward.1} parent=1 // pred_fallthru
      _
    // Predicated region
    $region22: #{sampler_forward.1} parent=1 // pred_check
      _
    $region23: #{sampler_forward.1} parent=1 // pred_check_branch
      %65 = sbr.rel (0) target = $region25
    $region24: #{sampler_forward.1} parent=1 // pred_region
      _
    $region25: #{sampler_forward.1} parent=1 // pred_fallthru
      _
    // Predicated region
    $region26: #{sampler_forward.1} parent=1 // pred_check
      _
    $region27: #{sampler_forward.1} parent=1 // pred_check_branch
      %67 = sbr.rel (0) target = $region29
    $region28: #{sampler_forward.1} parent=1 // pred_region
      %68 = dma.done [#allocation3], 128
    $region29: #{sampler_forward.1} parent=1 // pred_fallthru
      _
    // Predicated region
    $region30: #{sampler_forward.1} parent=1 // pred_check
      _
    $region31: #{sampler_forward.1} parent=1 // pred_check_branch
      %70 = sbr.rel (0) target = $region33
    $region32: #{sampler_forward.1} parent=1 // pred_region
      %71 = dma.done [#allocation7], 128
    $region33: #{sampler_forward.1} parent=1 // pred_fallthru
      _
    // Predicated region
    $region34: #{sampler_forward.1} parent=1 // pred_check
      _
    $region35: #{sampler_forward.1} parent=1 // pred_check_branch
      %73 = sbr.rel (0) target = $region37
    $region36: #{sampler_forward.1} parent=1 // pred_region
      %74 = dma.done [#allocation7], 256
    $region37: #{sampler_forward.1} parent=1 // pred_fallthru
      _
    // Predicated region
    $region38: #{sampler_forward.1} parent=1 // pred_check
      _
    $region39: #{sampler_forward.1} parent=1 // pred_check_branch
      %76 = sbr.rel (0) target = $region41
    $region40: #{sampler_forward.1} parent=1 // pred_region
      %77 = dma.done [#allocation10], 1024
    $region41: #{sampler_forward.1} parent=1 // pred_fallthru
      _
    %v79 = vld [vmem:[#allocation2] sm:$0xff]
    %v80 = vpack.c.bf16 %v79, %v79
    %v81 = vld [vmem:[#allocation8] sm:$0xf]
    %v82 = vld [vmem:[#allocation8 + $0x4] sm:$0xf]
    %v83 = vld [vmem:[#allocation8 + $0x8] sm:$0xf]
    %v84 = vld [vmem:[#allocation8 + $0xc] sm:$0xf]
    %v85 = vld [vmem:[%s3] sm:$0x1]
    %v87 = vlaneseq
    %v88 = vshrl.u32 %v87, 7
    %v89 = vsub.s32 0, %v88
    %v90 = vrot.slane %v85, %v89
    %v96 = vunpack.c.l.b16 %v81
    %v97 = vunpack.c.l.b16 %v82
    %v98 = vunpack.c.l.b16 %v83
    %v99 = vunpack.c.l.b16 %v84
    %v100 = vpack.c.b16 %v97, %v96
    %v101 = vpack.c.b16 %v99, %v98
    %vm104 = vcmask 261120
    %v106 = vsel %vm104, %v80, 0
    %108 = vmatprep.subr.bf16.mxu0 0
    %109 = vmatpush1.bf16.msra.mxu0 %v100
    %110 = vmatprep.subr.bf16.mxu0 0
    %111 = vmatpush1.bf16.msra.mxu0 %v101
    %112 = vmatprep.subr.bf16.mxu0 0
    %113 = vmatpush1.bf16.msra.mxu0 0
    %114 = vmatprep.subr.bf16.mxu0 0
    %115 = vmatpush1.bf16.msra.mxu0 0
    %116 = vmatprep.subr.bf16.mxu0 0
    %117 = vmatpush1.bf16.msra.mxu0 0
    %118 = vmatprep.subr.bf16.mxu0 0
    %119 = vmatpush1.bf16.msra.mxu0 0
    %120 = vmatprep.subr.bf16.mxu0 0
    %121 = vmatpush1.bf16.msra.mxu0 0
    %122 = vmatprep.subr.bf16.mxu0 0
    %123 = vmatpush1.bf16.msra.mxu0 0
    %124 = vmatprep.subr.bf16.mxu0 0
    %125 = vmatpush1.bf16.msra.mxu0 0
    %126 = vmatprep.subr.bf16.mxu0 0
    %127 = vmatpush1.bf16.msra.mxu0 0
    %128 = vmatprep.subr.bf16.mxu0 0
    %129 = vmatpush1.bf16.msra.mxu0 0
    %130 = vmatprep.subr.bf16.mxu0 0
    %131 = vmatpush1.bf16.msra.mxu0 0
    %132 = vmatprep.subr.bf16.mxu0 0
    %133 = vmatpush1.bf16.msra.mxu0 0
    %134 = vmatprep.subr.bf16.mxu0 0
    %135 = vmatpush1.bf16.msra.mxu0 0
    %136 = vmatprep.subr.bf16.mxu0 0
    %137 = vmatpush1.bf16.msra.mxu0 0
    %138 = vmatprep.subr.bf16.mxu0 0
    %139 = vmatpush1.bf16.msra.mxu0 0
    %140 = vmatprep.mubr.bf16.mxu0 0
    %141 = vmatmul.mubr.bf16.gmra.mrb[0].mxu0 %v106
    %v142 = vpop.f32.mrb[0].mxu0
    %v143 = vadd.f32 %v90, %v142
    %v144 = vpop.f32.mrb[0].mxu0
    %v145 = vpop.f32.mrb[0].mxu0
    %v146 = vpop.f32.mrb[0].mxu0
    %147 = vdwg.mxu0
    %v148 = vmax.f32 %v143, 0.0
    %v149 = vpack.c.bf16 %v148, %v148
    %v150 = vld [vmem:[#allocation9] sm:$0xff]
    %v151 = vld [vmem:[#allocation9 + $0x8] sm:$0xff]
    %v152 = vld [vmem:[#allocation9 + $0x10] sm:$0xff]
    %v153 = vld [vmem:[#allocation9 + $0x18] sm:$0xff]
    %v154 = vld [vmem:[#allocation9 + $0x20] sm:$0xff]
    %v155 = vld [vmem:[#allocation9 + $0x28] sm:$0xff]
    %v156 = vld [vmem:[#allocation9 + $0x30] sm:$0xff]
    %v157 = vld [vmem:[#allocation9 + $0x38] sm:$0xff]
    %v158 = vld [vmem:[%s5] sm:$0x3]
    %v160 = vlaneseq
    %v161 = vshrl.u32 %v160, 7
    %v162 = vsub.s32 0, %v161
    %v163 = vrot.slane %v158, %v162
    %v164 = vlaneseq
    %v165 = vshrl.u32 %v164, 7
    %v166 = vsub.s32 1, %v165
    %v167 = vrot.slane %v158, %v166
    %v178 = vunpack.c.l.b16 %v150
    %v179 = vunpack.c.h.b16 %v150
    %v180 = vunpack.c.l.b16 %v151
    %v181 = vunpack.c.h.b16 %v151
    %v182 = vunpack.c.l.b16 %v152
    %v183 = vunpack.c.h.b16 %v152
    %v184 = vunpack.c.l.b16 %v153
    %v185 = vunpack.c.h.b16 %v153
    %v186 = vunpack.c.l.b16 %v154
    %v187 = vunpack.c.h.b16 %v154
    %v188 = vunpack.c.l.b16 %v155
    %v189 = vunpack.c.h.b16 %v155
    %v190 = vunpack.c.l.b16 %v156
    %v191 = vunpack.c.h.b16 %v156
    %v192 = vunpack.c.l.b16 %v157
    %v193 = vunpack.c.h.b16 %v157
    %v194 = vpack.c.b16 %v180, %v178
    %v195 = vpack.c.b16 %v181, %v179
    %v196 = vpack.c.b16 %v184, %v182
    %v197 = vpack.c.b16 %v185, %v183
    %v198 = vpack.c.b16 %v188, %v186
    %v199 = vpack.c.b16 %v189, %v187
    %v200 = vpack.c.b16 %v192, %v190
    %v201 = vpack.c.b16 %v193, %v191
    %vm210 = vcmask 523264
    %v212 = vsel %vm210, %v149, 0
    %214 = vmatprep.subr.bf16.mxu0 %v195
    %215 = vmatpush1.bf16.msra.mxu0 %v194
    %216 = vmatprep.subr.bf16.mxu0 %v197
    %217 = vmatpush1.bf16.msra.mxu0 %v196
    %218 = vmatprep.subr.bf16.mxu0 %v199
    %219 = vmatpush1.bf16.msra.mxu0 %v198
    %220 = vmatprep.subr.bf16.mxu0 %v201
    %221 = vmatpush1.bf16.msra.mxu0 %v200
    %222 = vmatprep.subr.bf16.mxu0 0
    %223 = vmatpush1.bf16.msra.mxu0 0
    %224 = vmatprep.subr.bf16.mxu0 0
    %225 = vmatpush1.bf16.msra.mxu0 0
    %226 = vmatprep.subr.bf16.mxu0 0
    %227 = vmatpush1.bf16.msra.mxu0 0
    %228 = vmatprep.subr.bf16.mxu0 0
    %229 = vmatpush1.bf16.msra.mxu0 0
    %230 = vmatprep.subr.bf16.mxu0 0
    %231 = vmatpush1.bf16.msra.mxu0 0
    %232 = vmatprep.subr.bf16.mxu0 0
    %233 = vmatpush1.bf16.msra.mxu0 0
    %234 = vmatprep.subr.bf16.mxu0 0
    %235 = vmatpush1.bf16.msra.mxu0 0
    %236 = vmatprep.subr.bf16.mxu0 0
    %237 = vmatpush1.bf16.msra.mxu0 0
    %238 = vmatprep.subr.bf16.mxu0 0
    %239 = vmatpush1.bf16.msra.mxu0 0
    %240 = vmatprep.subr.bf16.mxu0 0
    %241 = vmatpush1.bf16.msra.mxu0 0
    %242 = vmatprep.subr.bf16.mxu0 0
    %243 = vmatpush1.bf16.msra.mxu0 0
    %244 = vmatprep.subr.bf16.mxu0 0
    %245 = vmatpush1.bf16.msra.mxu0 0
    %246 = vmatprep.mubr.bf16.mxu0 0
    %247 = vmatmul.mubr.bf16.gmra.mrb[0].mxu0 %v212
    %v248 = vpop.f32.mrb[0].mxu0
    %v249 = vadd.f32 %v163, %v248
    %v250 = vpop.f32.mrb[0].mxu0
    %v251 = vadd.f32 %v167, %v250
    %v252 = vpop.f32.mrb[0].mxu0
    %v253 = vpop.f32.mrb[0].mxu0
    %254 = vdwg.mxu0
    %v255 = vmul.f32 %v251, 0.5
    %v256 = vmul.f32 %v255, 1.442695
    %v257 = vpow.pop %v256
    %v258 = vld [vmem:[#allocation6] sm:$0xff]
    %v259 = vmul.f32 %v258, %v257
    %v260 = vadd.f32 %v259, %v249
    %261 = vst [vmem:[#allocation11] sm:$0xff] %v260
    %v262 = vadd.f32 %v251, 1.0
    %v263 = vmul.f32 %v249, %v249
    %v264 = vsub.f32 %v262, %v263
    %v265 = vmul.f32 %v257, %v257
    %v266 = vsub.f32 %v264, %v265
    %267 = vadd.xlane.f32.xlu0 %v266
    %v268 = vpop.xlane.xlu0 %267
    %v269 = vrot.slane %v268, 4
    %v270 = vadd.f32 %v268, %v269
    %v271 = vrot.slane %v270, 2
    %v272 = vadd.f32 %v270, %v271
    %v273 = vrot.slane %v272, 1
    %v274 = vadd.f32 %v272, %v273
    %s275 = vtos %v274
    %s276 = smul.f32 %s275, -0.5
    %s277 = scalar_lea.smem [#allocation12], 0
    %278 = sst [smem:[%s277]] %s276
    // Predicated region
    $region42: #{sampler_forward.1} parent=1 // pred_check
      _
    $region43: #{sampler_forward.1} parent=1 // pred_check_branch
      %280 = sbr.rel (0) target = $region45
    $region44: #{sampler_forward.1} parent=1 // pred_region
      %s282 = ssub.s32 128, 128
      %283 = vsyncadd [#allocation4], %s282
      %s285 = sshll.u32 [#allocation11], 4
      %s286 = int_to_ptr.vmem [resolvable:$true] %s285
      %288 = dma.vmem_to_hbm [thread:$0]  %s286, 128, %s6, [#allocation4]
    $region45: #{sampler_forward.1} parent=1 // pred_fallthru
      _
    // Predicated region
    $region46: #{sampler_forward.1} parent=1 // pred_check
      _
    $region47: #{sampler_forward.1} parent=1 // pred_check_branch
      %290 = sbr.rel (0) target = $region49
    $region48: #{sampler_forward.1} parent=1 // pred_region
      %s292 = ssub.s32 16, 16
      %293 = vsyncadd [#allocation5], %s292
      %296 = dma.smem_to_hbm [#allocation12], 16, %s7, [#allocation5]
    $region49: #{sampler_forward.1} parent=1 // pred_fallthru
      _
    // Predicated region
    $region50: #{sampler_forward.1} parent=1 // pred_check
      _
    $region51: #{sampler_forward.1} parent=1 // pred_check_branch
      %298 = sbr.rel (0) target = $region53
    $region52: #{sampler_forward.1} parent=1 // pred_region
      %299 = dma.done [#allocation4], 128
    $region53: #{sampler_forward.1} parent=1 // pred_fallthru
      _
    // Predicated region
    $region54: #{sampler_forward.1} parent=1 // pred_check
      _
    $region55: #{sampler_forward.1} parent=1 // pred_check_branch
      %301 = sbr.rel (0) target = $region57
    $region56: #{sampler_forward.1} parent=1 // pred_region
      %302 = dma.done [#allocation5], 16
    $region57: #{sampler_forward.1} parent=1 // pred_fallthru
      _
    %303 = sfence
    %304 = vsyncpa [#allocation3], 1
    %305 = vsyncpa [#allocation7], 1
    %306 = vsyncpa [#allocation10], 1
    %307 = vsyncpa [#allocation4], 1
    %308 = vsyncpa [#allocation5], 1

</llo_original>
